<compile_context>
chip_gen: v7x
topology: tpu7x:2x2x1
jax: 0.10.0
libtpu: 0.0.40
codegen_flags: <defaults>
</compile_context>

<pallas_src>
import functools

import jax
import jax.numpy as jnp
import numpy as np
from jax.experimental import pallas as pl
from jax.experimental.pallas import tpu as pltpu


# ----------------------------------------------------------------------------
# Tiling helpers
# ----------------------------------------------------------------------------
def _pick_hw_chunk(hw, max_chunk=2048):
    """Largest lane-aligned chunk (multiple of 128) dividing hw, capped at max_chunk."""
    if hw <= max_chunk:
        return hw
    for chunk in range(max_chunk, 127, -128):
        if hw % chunk == 0:
            return chunk
    return hw  # no clean divisor: fall back to a single (un-tiled) chunk


def _as_2d(x):
    """Reshape to a lane-dense 2-D view (last dim a multiple of 128 when possible)."""
    n = x.size
    for cols in (2048, 1024, 512, 256, 128):
        if n % cols == 0:
            return x.reshape(n // cols, cols)
    return x.reshape(1, n)


def _pick_row_chunk(rows, cols, target_bytes=4 * 1024 * 1024):
    """Row-tile so one fp32 block is ~target_bytes; multiple of 8 (or full rows)."""
    max_rows = max(8, target_bytes // (cols * 4))
    if rows <= max_rows:
        return rows
    start = (max_rows // 8) * 8
    for tr in range(start, 0, -8):
        if rows % tr == 0:
            return tr
    return rows


# ----------------------------------------------------------------------------
# Style-loss kernel (per layer): Gram + mean SSE, HW-tiled reduction
# ----------------------------------------------------------------------------
def _make_style_kernel(inv_hw_sq, gram_scale_sq):
    dn = (((1,), (1,)), ((), ()))  # contract over the lane-major HW axis

    def kernel(t_ref, s_ref, out_ref, gram_acc, sum_acc):
        k = pl.program_id(1)

        @pl.when(k == 0)
        def _():
            gram_acc[...] = jnp.zeros_like(gram_acc)
            sum_acc[...] = jnp.zeros_like(sum_acc)

        tf = t_ref[...].astype(jnp.float32)   # (C, HW_CHUNK)
        sf = s_ref[...].astype(jnp.float32)   # (C, HW_CHUNK)

        # Raw (unscaled) Gram difference / row-sum difference; the 1/(C*HW)
        # and 1/HW scalings are deferred to the scalar epilogue (identical
        # math, removes per-step (C,C) VPU multiplies).
        gram_acc[...] += (
            jax.lax.dot_general(tf, tf, dimension_numbers=dn,
                                preferred_element_type=jnp.float32)
            - jax.lax.dot_general(sf, sf, dimension_numbers=dn,
                                  preferred_element_type=jnp.float32))
        sum_acc[...] += (jnp.sum(tf, axis=1, keepdims=True)
                         - jnp.sum(sf, axis=1, keepdims=True))

        @pl.when(k == pl.num_programs(1) - 1)
        def _():
            d_sum = sum_acc[...]
            d_gram = gram_acc[...]
            out_ref[0, 0] = (jnp.sum(d_sum * d_sum) * jnp.float32(inv_hw_sq)
                             + jnp.sum(d_gram * d_gram) * jnp.float32(gram_scale_sq))

    return kernel


def style_loss_pallas(t_feat, s_feat, *, max_hw_chunk=2048):
    """styleLoss()(t_feat, s_feat) -- t/s are (B, C, H, W)."""
    b, c, h, w = t_feat.shape
    hw = h * w
    hw_chunk = _pick_hw_chunk(hw, max_hw_chunk)
    num_k = hw // hw_chunk

    t3 = t_feat.reshape(b, c, hw)
    s3 = s_feat.reshape(b, c, hw)

    inv_hw_sq = 1.0 / float(hw * hw)
    gram_scale_sq = 1.0 / float((c * hw) ** 2)
    kernel = _make_style_kernel(inv_hw_sq, gram_scale_sq)

    itemsize = jnp.dtype(t_feat.dtype).itemsize
    cost = pl.CostEstimate(
        flops=int(4 * b * c * c * hw),             # two Grams per batch elem
        transcendentals=0,
        bytes_accessed=int(2 * b * c * hw * itemsize + 4 * b))

    feat_spec = pl.BlockSpec((pl.Squeezed(), c, hw_chunk),
                             lambda i, k: (i, 0, k))

    out = pl.pallas_call(
        kernel,
        out_shape=jax.ShapeDtypeStruct((b, 1), jnp.float32),
        grid=(b, num_k),
        in_specs=[feat_spec, feat_spec],
        out_specs=pl.BlockSpec((1, 1), lambda i, k: (i, 0),
                               memory_space=pltpu.MemorySpace.SMEM),
        scratch_shapes=[pltpu.VMEM((c, c), jnp.float32),
                        pltpu.VMEM((c, 1), jnp.float32)],
        compiler_params=pltpu.CompilerParams(
            dimension_semantics=("parallel", "arbitrary"),
            vmem_limit_bytes=64 * 1024 * 1024),
        cost_estimate=cost,
    )(t3, s3)
    # styleLoss sums the per-batch SSE losses and divides by the target batch.
    return jnp.sum(out) / jnp.float32(b)


# ----------------------------------------------------------------------------
# Fused content-MSE (all layers) + KL-sum kernel: one pallas_call
# ----------------------------------------------------------------------------
def _make_content_kl_kernel(nblocks, inv_ns, num_steps):
    n_layers = len(nblocks)

    def kernel(*refs):
        # refs = (t0, c0, t1, c1, ..., kl, out)
        out_ref = refs[-1]
        kl_ref = refs[-2]
        i = pl.program_id(0)

        @pl.when(i == 0)
        def _():
            out_ref[0, 0] = jnp.float32(0.0)
            out_ref[0, 1] = jnp.sum(kl_ref[...].astype(jnp.float32))

        for l in range(n_layers):
            t_ref = refs[2 * l]
            c_ref = refs[2 * l + 1]
            inv_n = inv_ns[l]
            nb = nblocks[l]

            def body(t_ref=t_ref, c_ref=c_ref, inv_n=inv_n):
                d = t_ref[...].astype(jnp.float32) - c_ref[...].astype(jnp.float32)
                out_ref[0, 0] += jnp.sum(d * d) * jnp.float32(inv_n)

            if nb == num_steps:
                body()
            else:
                pl.when(i < nb)(body)

    return kernel


def content_kl_pallas(t_list, c_list, kl):
    """Returns (sum_over_layers(mean MSE), sum(KL)) from one fused pallas_call."""
    args, specs, nblocks, inv_ns = [], [], [], []
    for t, c in zip(t_list, c_list):
        n = t.size
        t2 = _as_2d(t)
        c2 = _as_2d(c)
        rows, cols = t2.shape
        tr = _pick_row_chunk(rows, cols)
        nb = rows // tr
        spec = pl.BlockSpec((tr, cols),
                            lambda i, nb=nb: (jnp.minimum(i, nb - 1), 0))
        args += [t2, c2]
        specs += [spec, spec]
        nblocks.append(nb)
        inv_ns.append(1.0 / float(n))

    kl2 = _as_2d(kl)
    args.append(kl2)
    specs.append(pl.BlockSpec(kl2.shape, lambda i: (0, 0)))

    num_steps = max(nblocks) if nblocks else 1
    kernel = _make_content_kl_kernel(tuple(nblocks), tuple(inv_ns), num_steps)

    out = pl.pallas_call(
        kernel,
        out_shape=jax.ShapeDtypeStruct((1, 2), jnp.float32),
        grid=(num_steps,),
        in_specs=specs,
        out_specs=pl.BlockSpec((1, 2), lambda i: (0, 0),
                               memory_space=pltpu.MemorySpace.SMEM),
        compiler_params=pltpu.CompilerParams(
            dimension_semantics=("arbitrary",)),
    )(*args)
    return out[0, 0], out[0, 1]


# ----------------------------------------------------------------------------
# LossCriterion
# ----------------------------------------------------------------------------
class LossCriterionPallas:
    """JAX/Pallas equivalent of LossCriterion.forward."""

    def __init__(self, style_layers, content_layers, style_weight, content_weight):
        self.style_layers = list(style_layers)
        self.content_layers = list(content_layers)
        self.style_weight = float(style_weight)
        self.content_weight = float(content_weight)

    def __call__(self, tF, sF, cF, KL):
        # Fused content-MSE (all layers) + KL-sum: one kernel launch.
        t_list = [tF[l] for l in self.content_layers]
        c_list = [jax.lax.stop_gradient(cF[l]) for l in self.content_layers]  # .detach()
        content_sum, kl = content_kl_pallas(t_list, c_list, KL)
        total_content = content_sum * jnp.float32(self.content_weight)

        # TODO(synk): the detached target Grams (sF) are constant across a
        # style-transfer optimization loop and could be precomputed once and
        # cached, but the original module recomputes them every forward, so we
        # keep that interface/semantics here.
        total_style = jnp.float32(0.0)
        for layer in self.style_layers:
            sf_i = jax.lax.stop_gradient(sF[layer])          # .detach()
            total_style = total_style + style_loss_pallas(tF[layer], sf_i)
        total_style = total_style * jnp.float32(self.style_weight)

        loss = total_style + total_content + kl
        return loss, total_style, total_content, kl


# ----------------------------------------------------------------------------
# Pure-JAX reference (for verification only)
# ----------------------------------------------------------------------------
def _ref_style_loss(t, s):
    b, c, h, w = t.shape
    tf = t.reshape(b, c, -1)
    sf = s.reshape(b, c, -1)
    t_mean = tf.mean(axis=2)
    s_mean = sf.mean(axis=2)
    t_g = jnp.einsum("bci,bdi->bcd", tf, tf) / (c * h * w)
    s_g = jnp.einsum("bci,bdi->bcd", sf, sf) / (c * h * w)
    return (jnp.sum((t_mean - s_mean) ** 2) + jnp.sum((t_g - s_g) ** 2)) / b


def _ref_forward(tF, sF, cF, KL, style_layers, content_layers, sw, cw):
    tc_ = sum(jnp.mean((tF[l] - cF[l]) ** 2) for l in content_layers) * cw
    ts_ = sum(_ref_style_loss(tF[l], sF[l]) for l in style_layers) * sw
    kl = jnp.sum(KL)
    return ts_ + tc_ + kl, ts_, tc_, kl


# ----------------------------------------------------------------------------
# Main
# ----------------------------------------------------------------------------
if __name__ == "__main__":
    key = jax.random.PRNGKey(0)

    # Layer shapes (NCHW), small but representative of a VGG-style encoder.
    layer_shapes = {
        "r11": (2, 8, 16, 16),
        "r21": (2, 16, 16, 16),
        "r31": (2, 32, 8, 16),
        "r41": (2, 32, 8, 8),
    }
    style_layers = ["r11", "r21", "r31", "r41"]
    content_layers = ["r41"]
    style_weight = 0.02
    content_weight = 1.0

    tF, sF, cF = {}, {}, {}
    for name, shp in layer_shapes.items():
        key, k1, k2, k3 = jax.random.split(key, 4)
        tF[name] = jax.random.normal(k1, shp, dtype=jnp.float32)
        sF[name] = jax.random.normal(k2, shp, dtype=jnp.float32)
        cF[name] = jax.random.normal(k3, shp, dtype=jnp.float32)
    key, kkl = jax.random.split(key)
    KL = jax.random.normal(kkl, (2, 64), dtype=jnp.float32)

    criterion = LossCriterionPallas(style_layers, content_layers,
                                    style_weight, content_weight)
    loss, style_l, content_l, kl = criterion(tF, sF, cF, KL)
    jax.block_until_ready((loss, style_l, content_l, kl))

    # Verify against a pure-JAX reference of the PyTorch semantics.
    ref = _ref_forward(tF, sF, cF, KL, style_layers, content_layers,
                       style_weight, content_weight)
    got = (loss, style_l, content_l, kl)
    for g, r in zip(got, ref):
        np.testing.assert_allclose(np.asarray(g), np.asarray(r),
                                   rtol=1e-4, atol=1e-4)

    print("KERNEL_OK")
</pallas_src>

<mosaic_0001>
module attributes {stable_mosaic.version = 11 : i64} {
  func.func @kernel(%arg0: i32, %arg1: memref<2x2048xf32, #tpu.memory_space<vmem>>, %arg2: memref<2x2048xf32, #tpu.memory_space<vmem>>, %arg3: memref<1x128xf32, #tpu.memory_space<vmem>>, %arg4: memref<1x2xf32, #tpu.memory_space<smem>>) attributes {dimension_semantics = [#tpu.dimension_semantics<arbitrary>], iteration_bounds = array<i64: 1>, scalar_prefetch = 0 : i64, scratch_operands = 0 : i64, tpu.core_type = #tpu.core_type<tc>, window_params = [{transform_indices = @transform_0, window_bounds = array<i64: 2, 2048>}, {transform_indices = @transform_1, window_bounds = array<i64: 2, 2048>}, {pipeline_mode = #tpu.pipeline_mode<synchronous>, transform_indices = @transform_2, window_bounds = array<i64: 1, 128>}, {transform_indices = @transform_3, window_bounds = array<i64: 1, 2>}]} {
    %c0_i32 = arith.constant 0 : i32
    %0 = arith.cmpi eq, %arg0, %c0_i32 : i32
    %1 = arith.extui %0 : i1 to i32
    %c0_i32_0 = arith.constant 0 : i32
    %2 = arith.cmpi ne, %1, %c0_i32_0 : i32
    scf.if %2 {
      %cst_9 = arith.constant 0.000000e+00 : f32
      %c0_10 = arith.constant 0 : index
      %c0_11 = arith.constant 0 : index
      %15 = memref.load %arg4[%c0_10, %c0_11] : memref<1x2xf32, #tpu.memory_space<smem>>
      memref.store %cst_9, %arg4[%c0_10, %c0_11] : memref<1x2xf32, #tpu.memory_space<smem>>
      %c0_12 = arith.constant 0 : index
      %c0_13 = arith.constant 0 : index
      %16 = vector.load %arg3[%c0_12, %c0_13] : memref<1x128xf32, #tpu.memory_space<vmem>>, vector<1x128xf32>
      %17 = vector.shape_cast %16 : vector<1x128xf32> to vector<1x1x128xf32>
      %cst_14 = arith.constant dense<0.000000e+00> : vector<1xf32>
      %18 = vector.multi_reduction <add>, %17, %cst_14 [1, 2] : vector<1x1x128xf32> to vector<1xf32>
      %19 = vector.shape_cast %18 : vector<1xf32> to vector<1x1x1xf32>
      %20 = vector.extract %19[0, 0, 0] : f32 from vector<1x1x1xf32>
      %c0_15 = arith.constant 0 : index
      %c1 = arith.constant 1 : index
      %21 = memref.load %arg4[%c0_15, %c1] : memref<1x2xf32, #tpu.memory_space<smem>>
      memref.store %20, %arg4[%c0_15, %c1] : memref<1x2xf32, #tpu.memory_space<smem>>
    } else {
    }
    %c0 = arith.constant 0 : index
    %c0_1 = arith.constant 0 : index
    %3 = vector.load %arg1[%c0, %c0_1] : memref<2x2048xf32, #tpu.memory_space<vmem>>, vector<2x2048xf32>
    %c0_2 = arith.constant 0 : index
    %c0_3 = arith.constant 0 : index
    %4 = vector.load %arg2[%c0_2, %c0_3] : memref<2x2048xf32, #tpu.memory_space<vmem>>, vector<2x2048xf32>
    %5 = arith.subf %3, %4 : vector<2x2048xf32>
    %c0_4 = arith.constant 0 : index
    %c0_5 = arith.constant 0 : index
    %6 = memref.load %arg4[%c0_4, %c0_5] : memref<1x2xf32, #tpu.memory_space<smem>>
    %7 = arith.mulf %5, %5 : vector<2x2048xf32>
    %8 = vector.shape_cast %7 : vector<2x2048xf32> to vector<1x2x2048xf32>
    %cst = arith.constant dense<0.000000e+00> : vector<1xf32>
    %9 = vector.multi_reduction <add>, %8, %cst [1, 2] : vector<1x2x2048xf32> to vector<1xf32>
    %10 = vector.shape_cast %9 : vector<1xf32> to vector<1x1x1xf32>
    %11 = vector.extract %10[0, 0, 0] : f32 from vector<1x1x1xf32>
    %cst_6 = arith.constant 2.44140625E-4 : f32
    %12 = arith.mulf %11, %cst_6 : f32
    %13 = arith.addf %6, %12 : f32
    %c0_7 = arith.constant 0 : index
    %c0_8 = arith.constant 0 : index
    %14 = memref.load %arg4[%c0_7, %c0_8] : memref<1x2xf32, #tpu.memory_space<smem>>
    memref.store %13, %arg4[%c0_7, %c0_8] : memref<1x2xf32, #tpu.memory_space<smem>>
    return
  }
  func.func @transform_0(%arg0: i32) -> (i32, i32) {
    %c0_i32 = arith.constant 0 : i32
    %0 = arith.minsi %arg0, %c0_i32 : i32
    %c0_i32_0 = arith.constant 0 : i32
    %c0_i32_1 = arith.constant 0 : i32
    return %0, %c0_i32_0 : i32, i32
  }
  func.func @transform_1(%arg0: i32) -> (i32, i32) {
    %c0_i32 = arith.constant 0 : i32
    %0 = arith.minsi %arg0, %c0_i32 : i32
    %c0_i32_0 = arith.constant 0 : i32
    %c0_i32_1 = arith.constant 0 : i32
    return %0, %c0_i32_0 : i32, i32
  }
  func.func @transform_2(%arg0: i32) -> (i32, i32) {
    %c0_i32 = arith.constant 0 : i32
    %c0_i32_0 = arith.constant 0 : i32
    %c0_i32_1 = arith.constant 0 : i32
    return %c0_i32, %c0_i32_0 : i32, i32
  }
  func.func @transform_3(%arg0: i32) -> (i32, i32) {
    %c0_i32 = arith.constant 0 : i32
    %c0_i32_0 = arith.constant 0 : i32
    %c0_i32_1 = arith.constant 0 : i32
    return %c0_i32, %c0_i32_0 : i32, i32
  }
}

</mosaic_0001>

<llo_original>
// kernel: tpu_custom_call.1
$region0: #{tpu_custom_call.1}
  #allocation0 [shape = 'u32[]', space=smem, size = 0x4, offset = 0x4, fixed_abs, tag = 'smem constant byte address 0x4 - core index']
  #allocation1 [shape = 'u32[144,128]{1,0:T(1,128)}', space=vmem, size = 0x12000, scoped, tag = 'internal scratch']
  %s0 = inlined_call_operand.hbm [shape: f32[2,2048], index: 0, kind: input, shape index: {}]
  %s1 = inlined_call_operand.hbm [shape: f32[2,2048], index: 1, kind: input, shape index: {}]
  %s2 = inlined_call_operand.vmem [shape: f32[1,128], index: 2, kind: input, shape index: {}]
  %s3 = inlined_call_operand.hbm [shape: f32[1,2], index: 3, kind: output, shape index: {}]
  %s4 = sld [smem:[#allocation0]]
  $region34: #{tpu_custom_call.1} parent=0
    _
  %s6 = ssub.s32 1, %s4
  %s7 = scalar_select 0, %s6, %s4
  $region1: #{tpu_custom_call.1} parent=0
    #allocation2 [shape = 'u8[16384]{0}', space=vmem, size = 0x4000, scoped, tag = 'input window, operand 0, single buffered']
    #allocation3 [shape = 's32[1]{0}', space=sflag, size = 0x4, scoped, tag = 'scoped memory for tpu_custom_call.1']
    #allocation4 [shape = 's32[1]{0}', space=sflag, size = 0x4, scoped, tag = 'scoped memory for tpu_custom_call.1']
    #allocation5 [shape = 'u8[16384]{0}', space=vmem, size = 0x4000, scoped, tag = 'input window, operand 1, single buffered']
    #allocation6 [shape = 's32[1]{0}', space=sflag, size = 0x4, scoped, tag = 'scoped memory for tpu_custom_call.1']
    #allocation7 [shape = 'u8[512]{0}', space=smem, size = 0x200, scoped, tag = 'output window, operand 0, single buffered']
    %8 = vsyncpa [#allocation3], 0
    %9 = vsyncpa [#allocation6], 0
    %10 = vsyncpa [#allocation4], 0
    // Predicated region
    $region2: #{tpu_custom_call.1} parent=1 // pred_check
      _
    $region3: #{tpu_custom_call.1} parent=1 // pred_check_branch
      %12 = sbr.rel (0) target = $region5
    $region4: #{tpu_custom_call.1} parent=1 // pred_region
      %s14 = ssub.s32 512, 512
      %15 = vsyncadd [#allocation3], %s14
      %s17 = sshll.u32 [#allocation2], 4
      %s18 = int_to_ptr.vmem [resolvable:$true] %s17
      %20 = dma.hbm_to_vmem [thread:$0]  %s0, 512, %s18, [#allocation3]
    $region5: #{tpu_custom_call.1} parent=1 // pred_fallthru
      _
    // Predicated region
    $region6: #{tpu_custom_call.1} parent=1 // pred_check
      _
    $region7: #{tpu_custom_call.1} parent=1 // pred_check_branch
      %22 = sbr.rel (0) target = $region9
    $region8: #{tpu_custom_call.1} parent=1 // pred_region
      %s24 = ssub.s32 512, 512
      %25 = vsyncadd [#allocation6], %s24
      %s27 = sshll.u32 [#allocation5], 4
      %s28 = int_to_ptr.vmem [resolvable:$true] %s27
      %30 = dma.hbm_to_vmem [thread:$0]  %s1, 512, %s28, [#allocation6]
    $region9: #{tpu_custom_call.1} parent=1 // pred_fallthru
      _
    // Predicated region
    $region10: #{tpu_custom_call.1} parent=1 // pred_check
      _
    $region11: #{tpu_custom_call.1} parent=1 // pred_check_branch
      %32 = sbr.rel (0) target = $region13
    $region12: #{tpu_custom_call.1} parent=1 // pred_region
      _
    $region13: #{tpu_custom_call.1} parent=1 // pred_fallthru
      _
    // Predicated region
    $region14: #{tpu_custom_call.1} parent=1 // pred_check
      _
    $region15: #{tpu_custom_call.1} parent=1 // pred_check_branch
      %34 = sbr.rel (0) target = $region17
    $region16: #{tpu_custom_call.1} parent=1 // pred_region
      %35 = dma.done [#allocation3], 512
    $region17: #{tpu_custom_call.1} parent=1 // pred_fallthru
      _
    // Predicated region
    $region18: #{tpu_custom_call.1} parent=1 // pred_check
      _
    $region19: #{tpu_custom_call.1} parent=1 // pred_check_branch
      %37 = sbr.rel (0) target = $region21
    $region20: #{tpu_custom_call.1} parent=1 // pred_region
      %38 = dma.done [#allocation6], 512
    $region21: #{tpu_custom_call.1} parent=1 // pred_fallthru
      _
    %p39 = scmp.eq.s32.totalorder 0, 0
    // Predicated region
    $region22: #{tpu_custom_call.1} parent=1 // pred_check
      %p40 = pneg %p39
    $region23: #{tpu_custom_call.1} parent=1 // pred_check_branch
      %42 = sbr.rel (%p40) target = $region25
    $region24: #{tpu_custom_call.1} parent=1 // pred_region
      %s43 = scalar_lea.smem [#allocation7], 0
      %44 = sst [smem:[%s43]] 0.0
      %v45 = vld [vmem:[%s2] sm:$0x1]
      %vm46 = vcmask 1040384
      %v47 = vsel %vm46, %v45, 0.0
      %48 = vadd.xlane.f32.xlu0 %v47
      %v49 = vpop.xlane.xlu0 %48
      %v50 = vrot.slane %v49, 4
      %v51 = vadd.f32 %v49, %v50
      %v52 = vrot.slane %v51, 2
      %v53 = vadd.f32 %v51, %v52
      %v54 = vrot.slane %v53, 1
      %v55 = vadd.f32 %v53, %v54
      %s56 = vtos %v55
      %s57 = scalar_lea.smem [#allocation7], 1
      %58 = sst [smem:[%s57]] %s56
    $region25: #{tpu_custom_call.1} parent=1 // pred_fallthru
      _
    %v59 = vld [vmem:[#allocation2] sm:$0xff]
    %v60 = vld [vmem:[#allocation2 + $0x8] sm:$0xff]
    %v61 = vld [vmem:[#allocation2 + $0x10] sm:$0xff]
    %v62 = vld [vmem:[#allocation2 + $0x18] sm:$0xff]
    %v63 = vld [vmem:[#allocation5] sm:$0xff]
    %v64 = vld [vmem:[#allocation5 + $0x8] sm:$0xff]
    %v65 = vld [vmem:[#allocation5 + $0x10] sm:$0xff]
    %v66 = vld [vmem:[#allocation5 + $0x18] sm:$0xff]
    %v67 = vsub.f32 %v59, %v63
    %v68 = vsub.f32 %v60, %v64
    %v69 = vsub.f32 %v61, %v65
    %v70 = vsub.f32 %v62, %v66
    %s71 = sld [smem:[#allocation7]]
    %v72 = vmul.f32 %v67, %v67
    %v73 = vmul.f32 %v68, %v68
    %v74 = vmul.f32 %v69, %v69
    %v75 = vmul.f32 %v70, %v70
    %v80 = vcombine.high %v72, %v72
    %v82 = vunpack.c.l.s4 1983009808
    %v83 = vunpack.c.0.s8 %v82
    %v84 = vlaneseq
    %v85 = vshrl.u32 %v84, 7
    %v86 = vsub.s32 %v83, %v85
    %v87 = vrot.slane %v72, %v86
    %v89 = vunpack.c.l.s4 1983009808
    %v90 = vunpack.c.0.s8 %v89
    %v91 = vlaneseq
    %v92 = vshrl.u32 %v91, 7
    %v93 = vsub.s32 %v90, %v92
    %v94 = vrot.slane %v80, %v93
    %v95 = vcombine.high %v87, %v87
    %v96 = vcombine.high %v94, %v94
    %v97 = vcombine.high %v73, %v73
    %v99 = vunpack.c.l.s4 1983009808
    %v100 = vunpack.c.0.s8 %v99
    %v101 = vlaneseq
    %v102 = vshrl.u32 %v101, 7
    %v103 = vsub.s32 %v100, %v102
    %v104 = vrot.slane %v73, %v103
    %v106 = vunpack.c.l.s4 1983009808
    %v107 = vunpack.c.0.s8 %v106
    %v108 = vlaneseq
    %v109 = vshrl.u32 %v108, 7
    %v110 = vsub.s32 %v107, %v109
    %v111 = vrot.slane %v97, %v110
    %v112 = vcombine.high %v104, %v104
    %v113 = vcombine.high %v111, %v111
    %v114 = vcombine.high %v74, %v74
    %v116 = vunpack.c.l.s4 1983009808
    %v117 = vunpack.c.0.s8 %v116
    %v118 = vlaneseq
    %v119 = vshrl.u32 %v118, 7
    %v120 = vsub.s32 %v117, %v119
    %v121 = vrot.slane %v74, %v120
    %v123 = vunpack.c.l.s4 1983009808
    %v124 = vunpack.c.0.s8 %v123
    %v125 = vlaneseq
    %v126 = vshrl.u32 %v125, 7
    %v127 = vsub.s32 %v124, %v126
    %v128 = vrot.slane %v114, %v127
    %v129 = vcombine.high %v121, %v121
    %v130 = vcombine.high %v128, %v128
    %v131 = vcombine.high %v75, %v75
    %v133 = vunpack.c.l.s4 1983009808
    %v134 = vunpack.c.0.s8 %v133
    %v135 = vlaneseq
    %v136 = vshrl.u32 %v135, 7
    %v137 = vsub.s32 %v134, %v136
    %v138 = vrot.slane %v75, %v137
    %v140 = vunpack.c.l.s4 1983009808
    %v141 = vunpack.c.0.s8 %v140
    %v142 = vlaneseq
    %v143 = vshrl.u32 %v142, 7
    %v144 = vsub.s32 %v141, %v143
    %v145 = vrot.slane %v131, %v144
    %v146 = vcombine.high %v138, %v138
    %v147 = vcombine.high %v145, %v145
    %vm164 = vcmask 1041408
    %v165 = vsel %vm164, %v87, 0.0
    %v166 = vsel %vm164, %v95, 0.0
    %v167 = vadd.f32 %v165, %v166
    %v168 = vsel %vm164, %v94, 0.0
    %v169 = vadd.f32 %v167, %v168
    %v170 = vsel %vm164, %v96, 0.0
    %v171 = vadd.f32 %v169, %v170
    %v172 = vsel %vm164, %v104, 0.0
    %v173 = vadd.f32 %v171, %v172
    %v174 = vsel %vm164, %v112, 0.0
    %v175 = vadd.f32 %v173, %v174
    %v176 = vsel %vm164, %v111, 0.0
    %v177 = vadd.f32 %v175, %v176
    %v178 = vsel %vm164, %v113, 0.0
    %v179 = vadd.f32 %v177, %v178
    %v180 = vsel %vm164, %v121, 0.0
    %v181 = vadd.f32 %v179, %v180
    %v182 = vsel %vm164, %v129, 0.0
    %v183 = vadd.f32 %v181, %v182
    %v184 = vsel %vm164, %v128, 0.0
    %v185 = vadd.f32 %v183, %v184
    %v186 = vsel %vm164, %v130, 0.0
    %v187 = vadd.f32 %v185, %v186
    %v188 = vsel %vm164, %v138, 0.0
    %v189 = vadd.f32 %v187, %v188
    %v190 = vsel %vm164, %v146, 0.0
    %v191 = vadd.f32 %v189, %v190
    %v192 = vsel %vm164, %v145, 0.0
    %v193 = vadd.f32 %v191, %v192
    %v194 = vsel %vm164, %v147, 0.0
    %v195 = vadd.f32 %v193, %v194
    %196 = vadd.xlane.f32.xlu0 %v195
    %v197 = vpop.xlane.xlu0 %196
    %v198 = vrot.slane %v197, 4
    %v199 = vadd.f32 %v197, %v198
    %v200 = vrot.slane %v199, 2
    %v201 = vadd.f32 %v199, %v200
    %v202 = vrot.slane %v201, 1
    %v203 = vadd.f32 %v201, %v202
    %s204 = vtos %v203
    %s205 = smul.f32 %s204, 0.00024414063
    %s206 = sadd.f32 %s71, %s205
    %s207 = scalar_lea.smem [#allocation7], 0
    %208 = sst [smem:[%s207]] %s206
    // Predicated region
    $region26: #{tpu_custom_call.1} parent=1 // pred_check
      _
    $region27: #{tpu_custom_call.1} parent=1 // pred_check_branch
      %210 = sbr.rel (0) target = $region29
    $region28: #{tpu_custom_call.1} parent=1 // pred_region
      %s212 = ssub.s32 16, 16
      %213 = vsyncadd [#allocation4], %s212
      %216 = dma.smem_to_hbm [#allocation7], 16, %s3, [#allocation4]
    $region29: #{tpu_custom_call.1} parent=1 // pred_fallthru
      _
    // Predicated region
    $region30: #{tpu_custom_call.1} parent=1 // pred_check
      _
    $region31: #{tpu_custom_call.1} parent=1 // pred_check_branch
      %218 = sbr.rel (0) target = $region33
    $region32: #{tpu_custom_call.1} parent=1 // pred_region
      %219 = dma.done [#allocation4], 16
    $region33: #{tpu_custom_call.1} parent=1 // pred_fallthru
      _
    %220 = sfence
    %221 = vsyncpa [#allocation3], 1
    %222 = vsyncpa [#allocation6], 1
    %223 = vsyncpa [#allocation4], 1

</llo_original>
